<compile_context>
chip_gen: v7x
topology: tpu7x:2x2x1
jax: 0.10.0
libtpu: 0.0.40
codegen_flags: <defaults>
</compile_context>

<pallas_src>
import jax
import jax.numpy as jnp
from jax.experimental import pallas as pl
from jax.experimental.pallas import tpu as pltpu

F_IN, F_HID, F_OUT = 2, 16, 2
LANES = 128


def _mlp_kernel(xT_ref, w1_ref, b1_ref, w2_ref, b2_ref, oT_ref):
    # Feature-major compute: xT [2, TB], h [16, TB], out [2, TB] -- batch on lanes.
    x0 = xT_ref[0:1, :]                                              # [1, TB]
    x1 = xT_ref[1:2, :]                                              # [1, TB]
    # Layer 1: K=2 is degenerate for the MXU -> VPU broadcast-FMAs + bias + ReLU.
    h = jnp.maximum(
        w1_ref[:, 0:1] * x0 + w1_ref[:, 1:2] * x1 + b1_ref[...], 0.0)  # [16, TB]
    # Layer 2: K=16 contraction on the (otherwise idle) MXU.
    y = jnp.dot(w2_ref[...], h, preferred_element_type=jnp.float32)    # [2, TB]
    oT_ref[...] = (y + b2_ref[...]).astype(oT_ref.dtype)


def _pick_batch_tile(b_lane_groups: int, tb_request: int) -> int:
    """Pick the batch tile in lanes: always a multiple of 128, never larger than
    the (lane-rounded) batch, and capped so the grid has >= 2 steps whenever the
    batch allows it (v7x megacore; no-op on v5e/v6e)."""
    g = max(1, tb_request // LANES)            # requested tile in 128-lane groups
    g = min(g, b_lane_groups)
    if b_lane_groups >= 2:
        g = min(g, pl.cdiv(b_lane_groups, 2))  # guarantee >= 2 grid steps
    return g * LANES


def simple_nn_forward_fm(xT, w1, b1, w2, b2, *, tb=32768):
    """Feature-major fast path: xT [2, B] f32 -> yT [2, B] f32.

    No wrapper-side layout passes: input and output are lane-dense contiguous
    HBM slabs, weights/biases stay resident in VMEM via constant index_maps.
    """
    f_in, batch = xT.shape
    assert f_in == F_IN
    b_groups = pl.cdiv(batch, LANES)
    tb_lanes = _pick_batch_tile(b_groups, tb)
    grid = pl.cdiv(batch, tb_lanes)            # ragged last block handled by Pallas

    return pl.pallas_call(
        _mlp_kernel,
        out_shape=jax.ShapeDtypeStruct((F_OUT, batch), jnp.float32),
        grid=(grid,),
        in_specs=[
            # x^T tiles walk the batch (lane) axis and are double-buffered.
            pl.BlockSpec((F_IN, tb_lanes), lambda i: (0, i)),
            # Weights/biases: constant block index -> DMA'd once, stay resident.
            pl.BlockSpec((F_HID, F_IN), lambda i: (0, 0)),
            pl.BlockSpec((F_HID, 1), lambda i: (0, 0)),
            pl.BlockSpec((F_OUT, F_HID), lambda i: (0, 0)),
            pl.BlockSpec((F_OUT, 1), lambda i: (0, 0)),
        ],
        out_specs=pl.BlockSpec((F_OUT, tb_lanes), lambda i: (0, i)),
        compiler_params=pltpu.CompilerParams(
            dimension_semantics=("parallel",),        # megacore split on v7x
            vmem_limit_bytes=32 * 1024 * 1024,        # ~192*tb bytes used; headroom ok
        ),
    )(xT, w1, b1, w2, b2)


def simple_nn_forward(x, w1, b1, w2, b2, *, tb=32768):
    """PyTorch-convention entry point: x [B, 2] f32 -> y [B, 2] f32.

    Weights in PyTorch layout: w1 [16, 2], b1 [16, 1], w2 [2, 16], b2 [2, 1].
    Pays one XLA transpose each way (no pad, no slice); perf-sensitive callers
    should use simple_nn_forward_fm and keep activations feature-major.
    """
    yT = simple_nn_forward_fm(x.T, w1, b1, w2, b2, tb=tb)
    return yT.T


def init_params(key):
    """PyTorch nn.Linear default init: U(-1/sqrt(fan_in), 1/sqrt(fan_in));
    weights in [out, in] layout, biases as columns [out, 1] so they broadcast
    over the lane (batch) axis inside the kernel."""
    k1, k2, k3, k4 = jax.random.split(key, 4)
    bound1 = 1.0 / jnp.sqrt(2.0)    # fan_in = 2
    bound2 = 1.0 / jnp.sqrt(16.0)   # fan_in = 16
    w1 = jax.random.uniform(k1, (16, 2), jnp.float32, -bound1, bound1)
    b1 = jax.random.uniform(k2, (16, 1), jnp.float32, -bound1, bound1)
    w2 = jax.random.uniform(k3, (2, 16), jnp.float32, -bound2, bound2)
    b2 = jax.random.uniform(k4, (2, 1), jnp.float32, -bound2, bound2)
    return w1, b1, w2, b2


if __name__ == "__main__":
    key = jax.random.PRNGKey(0)
    pkey, xkey = jax.random.split(key)
    w1, b1, w2, b2 = init_params(pkey)

    # Batch deliberately NOT a multiple of 128: exercises the ragged final block
    # and (via the >=2-step megacore clamp) a 2-step pipelined grid.
    batch = 200
    x = jax.random.normal(xkey, (batch, 2), jnp.float32)

    out = jax.block_until_ready(simple_nn_forward(x, w1, b1, w2, b2))

    # Reference in plain JAX (PyTorch convention: y = x @ W^T + b).
    ref = jnp.maximum(x @ w1.T + b1[:, 0], 0.0) @ w2.T + b2[:, 0]
    assert out.shape == (batch, 2)
    err = float(jnp.max(jnp.abs(out - ref)))
    assert jnp.allclose(out, ref, atol=1e-5, rtol=1e-5), err

    # Also validate the zero-layout-pass feature-major fast path.
    outT = jax.block_until_ready(simple_nn_forward_fm(x.T, w1, b1, w2, b2))
    assert outT.shape == (2, batch)
    assert jnp.allclose(outT.T, ref, atol=1e-5, rtol=1e-5)

    print("KERNEL_OK")
</pallas_src>

<mosaic_0001>
module attributes {stable_mosaic.version = 11 : i64} {
  func.func @_mlp_kernel(%arg0: i32, %arg1: memref<2x128xf32, #tpu.memory_space<vmem>>, %arg2: memref<16x2xf32, #tpu.memory_space<vmem>>, %arg3: memref<16x1xf32, #tpu.memory_space<vmem>>, %arg4: memref<2x16xf32, #tpu.memory_space<vmem>>, %arg5: memref<2x1xf32, #tpu.memory_space<vmem>>, %arg6: memref<2x128xf32, #tpu.memory_space<vmem>>) attributes {dimension_semantics = [#tpu.dimension_semantics<parallel>], iteration_bounds = array<i64: 2>, scalar_prefetch = 0 : i64, scratch_operands = 0 : i64, tpu.core_type = #tpu.core_type<tc>, window_params = [{transform_indices = @transform_0, window_bounds = array<i64: 2, 128>}, {pipeline_mode = #tpu.pipeline_mode<synchronous>, transform_indices = @transform_1, window_bounds = array<i64: 16, 2>}, {pipeline_mode = #tpu.pipeline_mode<synchronous>, transform_indices = @transform_2, window_bounds = array<i64: 16, 1>}, {pipeline_mode = #tpu.pipeline_mode<synchronous>, transform_indices = @transform_3, window_bounds = array<i64: 2, 16>}, {pipeline_mode = #tpu.pipeline_mode<synchronous>, transform_indices = @transform_4, window_bounds = array<i64: 2, 1>}, {transform_indices = @transform_5, window_bounds = array<i64: 2, 128>}]} {
    %c0 = arith.constant 0 : index
    %c0_0 = arith.constant 0 : index
    %0 = vector.load %arg1[%c0, %c0_0] : memref<2x128xf32, #tpu.memory_space<vmem>>, vector<1x128xf32>
    %c1 = arith.constant 1 : index
    %c0_1 = arith.constant 0 : index
    %1 = vector.load %arg1[%c1, %c0_1] : memref<2x128xf32, #tpu.memory_space<vmem>>, vector<1x128xf32>
    %c0_2 = arith.constant 0 : index
    %c0_3 = arith.constant 0 : index
    %2 = vector.load %arg2[%c0_2, %c0_3] : memref<16x2xf32, #tpu.memory_space<vmem>>, vector<16x1xf32>
    %3 = vector.broadcast %2 : vector<16x1xf32> to vector<16x128xf32>
    %4 = vector.broadcast %0 : vector<1x128xf32> to vector<16x128xf32>
    %5 = arith.mulf %3, %4 : vector<16x128xf32>
    %c0_4 = arith.constant 0 : index
    %c1_5 = arith.constant 1 : index
    %6 = vector.load %arg2[%c0_4, %c1_5] : memref<16x2xf32, #tpu.memory_space<vmem>>, vector<16x1xf32>
    %7 = vector.broadcast %6 : vector<16x1xf32> to vector<16x128xf32>
    %8 = vector.broadcast %1 : vector<1x128xf32> to vector<16x128xf32>
    %9 = arith.mulf %7, %8 : vector<16x128xf32>
    %10 = arith.addf %5, %9 : vector<16x128xf32>
    %c0_6 = arith.constant 0 : index
    %c0_7 = arith.constant 0 : index
    %11 = vector.load %arg3[%c0_6, %c0_7] : memref<16x1xf32, #tpu.memory_space<vmem>>, vector<16x1xf32>
    %12 = vector.broadcast %11 : vector<16x1xf32> to vector<16x128xf32>
    %13 = arith.addf %10, %12 : vector<16x128xf32>
    %cst = arith.constant 0.000000e+00 : f32
    %14 = vector.broadcast %cst : f32 to vector<16x128xf32>
    %15 = arith.maximumf %13, %14 : vector<16x128xf32>
    %c0_8 = arith.constant 0 : index
    %c0_9 = arith.constant 0 : index
    %16 = vector.load %arg4[%c0_8, %c0_9] : memref<2x16xf32, #tpu.memory_space<vmem>>, vector<2x16xf32>
    %cst_10 = arith.constant dense<0.000000e+00> : vector<2x128xf32>
    %17 = tpu.matmul %16, %15, %cst_10 {dimension_numbers = #tpu.dot_dimension_numbers<[1], [0], [0], [1], [0, 0, 1, 1], [], []>} : vector<2x16xf32>, vector<16x128xf32>, vector<2x128xf32> -> vector<2x128xf32>
    %c0_11 = arith.constant 0 : index
    %c0_12 = arith.constant 0 : index
    %18 = vector.load %arg5[%c0_11, %c0_12] : memref<2x1xf32, #tpu.memory_space<vmem>>, vector<2x1xf32>
    %19 = vector.broadcast %18 : vector<2x1xf32> to vector<2x128xf32>
    %20 = arith.addf %17, %19 : vector<2x128xf32>
    %c0_13 = arith.constant 0 : index
    %c0_14 = arith.constant 0 : index
    %21 = vector.load %arg6[%c0_13, %c0_14] : memref<2x128xf32, #tpu.memory_space<vmem>>, vector<2x128xf32>
    tpu.vector_store %arg6[%c0_13, %c0_14], %20 {strides = array<i32>} : memref<2x128xf32, #tpu.memory_space<vmem>>, vector<2x128xf32>,
    return
  }
  func.func @transform_0(%arg0: i32) -> (i32, i32) {
    %c0_i32 = arith.constant 0 : i32
    %c0_i32_0 = arith.constant 0 : i32
    return %c0_i32, %arg0 : i32, i32
  }
  func.func @transform_1(%arg0: i32) -> (i32, i32) {
    %c0_i32 = arith.constant 0 : i32
    %c0_i32_0 = arith.constant 0 : i32
    %c0_i32_1 = arith.constant 0 : i32
    return %c0_i32, %c0_i32_0 : i32, i32
  }
  func.func @transform_2(%arg0: i32) -> (i32, i32) {
    %c0_i32 = arith.constant 0 : i32
    %c0_i32_0 = arith.constant 0 : i32
    %c0_i32_1 = arith.constant 0 : i32
    return %c0_i32, %c0_i32_0 : i32, i32
  }
  func.func @transform_3(%arg0: i32) -> (i32, i32) {
    %c0_i32 = arith.constant 0 : i32
    %c0_i32_0 = arith.constant 0 : i32
    %c0_i32_1 = arith.constant 0 : i32
    return %c0_i32, %c0_i32_0 : i32, i32
  }
  func.func @transform_4(%arg0: i32) -> (i32, i32) {
    %c0_i32 = arith.constant 0 : i32
    %c0_i32_0 = arith.constant 0 : i32
    %c0_i32_1 = arith.constant 0 : i32
    return %c0_i32, %c0_i32_0 : i32, i32
  }
  func.func @transform_5(%arg0: i32) -> (i32, i32) {
    %c0_i32 = arith.constant 0 : i32
    %c0_i32_0 = arith.constant 0 : i32
    return %c0_i32, %arg0 : i32, i32
  }
}

</mosaic_0001>

<llo_original>
// kernel: tpu_custom_call.1
$region0: #{tpu_custom_call.1}
  #allocation0 [shape = 'u32[]', space=smem, size = 0x4, offset = 0x4, fixed_abs, tag = 'smem constant byte address 0x4 - core index']
  #allocation1 [shape = 'u32[144,128]{1,0:T(1,128)}', space=vmem, size = 0x12000, scoped, tag = 'internal scratch']
  %s0 = inlined_call_operand.vmem [shape: f32[2,200], index: 0, kind: input, shape index: {}]
  %s1 = inlined_call_operand.vmem [shape: f32[16,2], index: 1, kind: input, shape index: {}]
  %s2 = inlined_call_operand.vmem [shape: f32[16,1], index: 2, kind: input, shape index: {}]
  %s3 = inlined_call_operand.vmem [shape: f32[2,16], index: 3, kind: input, shape index: {}]
  %s4 = inlined_call_operand.vmem [shape: f32[2,1], index: 4, kind: input, shape index: {}]
  %s5 = inlined_call_operand.hbm [shape: f32[2,200], index: 5, kind: output, shape index: {}]
  %s6 = sld [smem:[#allocation0]]
  $region53: #{tpu_custom_call.1} parent=0
    _
  %s8 = ssub.s32 1, %s6
  %s9 = scalar_select 0, %s8, %s6
  $region1: #{tpu_custom_call.1} parent=0
    #allocation2 [shape = 'u8[2048]{0}', space=vmem, size = 0x800, scoped, tag = 'output window, operand 0']
    #allocation3 [shape = 's32[2]{0}', space=sflag, size = 0x8, scoped, tag = 'scoped memory for tpu_custom_call.1']
    %10 = vsyncpa [#allocation3], 0
    %s11 = scalar_lea.sflag [#allocation3], 1
    %12 = vsyncpa %s11, 0
    loop: start=0, step=1, limit=4
    $region2: #{tpu_custom_call.1} parent=1 // loop_pre_header
      _
    $region3: #{tpu_custom_call.1} parent=1 // loop_header
      %s14 = sphi 0, %s18
      %p15 = scmp.ge.s32.totalorder %s14, 4
      %s24 = sphi 0, %s26
      %s27 = sphi 0, %s24
      %s28 = sphi 0, %s27
      %s44 = sphi 0, %s28
      %s48 = sphi 0, %s48
      %s50 = sphi 0, %s48
      %s51 = sphi 0, %s50
      %s65 = sphi 0, %s51
      %s69 = sphi 0, %s69
      %s71 = sphi 0, %s69
      %s72 = sphi 0, %s71
      %s86 = sphi 0, %s72
      %s90 = sphi 0, %s90
      %s92 = sphi 0, %s90
      %s93 = sphi 0, %s92
      %s107 = sphi 0, %s93
      %s111 = sphi 0, %s111
      %s113 = sphi 0, %s111
      %s114 = sphi 0, %s113
      %s128 = sphi 0, %s114
      %s134 = sphi 0, %s136
      %s137 = sphi 0, %s134
      %s138 = sphi 0, %s137
      %s154 = sphi 0, %s138
    $region4: #{tpu_custom_call.1} parent=1 // loop_header_branch
      %17 = sbr.rel (%p15) target = $region8
    $region5: #{tpu_custom_call.1} parent=1 // loop_body
      %s19 = ssub.s32 %s14, 1
      %s20 = ssub.s32 %s14, 2
      %s21 = sadd.s32 %s14, 1
      %s22 = ssub.s32 %s14, %s21
      %p23 = scmp.eq.s32.totalorder %s22, 0
      %s25 = sadd.s32 %s24, 1
      %s26 = scalar_select %p23, %s24, %s25
      %p29 = pneg %p23
      %p30 = scmp.eq.s32.totalorder %s14, 1
      %p31 = por %p29, %p30
      %p32 = scmp.ne.s32.totalorder %s24, %s27
      %p33 = scmp.eq.s32.totalorder %s14, 0
      %p34 = por %p32, %p33
      %p35 = scmp.ne.s32.totalorder %s24, %s27
      %p36 = scmp.eq.s32.totalorder %s19, 1
      %p37 = por %p35, %p36
      %p38 = scmp.ne.s32.totalorder %s27, %s28
      %p39 = scmp.eq.s32.totalorder %s19, 0
      %p40 = por %p38, %p39
      %p41 = scmp.ne.s32.totalorder %s27, %s28
      %p42 = scmp.eq.s32.totalorder %s20, 1
      %p43 = por %p41, %p42
      %p45 = scmp.ne.s32.totalorder %s28, %s44
      %p46 = scmp.eq.s32.totalorder %s20, 0
      %p47 = por %p45, %p46
      %s49 = sadd.s32 %s48, 1
      %p52 = scmp.eq.s32.totalorder %s14, 1
      %p53 = scmp.ne.s32.totalorder %s48, %s50
      %p54 = scmp.eq.s32.totalorder %s14, 0
      %p55 = por %p53, %p54
      %p56 = scmp.ne.s32.totalorder %s48, %s50
      %p57 = scmp.eq.s32.totalorder %s19, 1
      %p58 = por %p56, %p57
      %p59 = scmp.ne.s32.totalorder %s50, %s51
      %p60 = scmp.eq.s32.totalorder %s19, 0
      %p61 = por %p59, %p60
      %p62 = scmp.ne.s32.totalorder %s50, %s51
      %p63 = scmp.eq.s32.totalorder %s20, 1
      %p64 = por %p62, %p63
      %p66 = scmp.ne.s32.totalorder %s51, %s65
      %p67 = scmp.eq.s32.totalorder %s20, 0
      %p68 = por %p66, %p67
      %s70 = sadd.s32 %s69, 1
      %p73 = scmp.eq.s32.totalorder %s14, 1
      %p74 = scmp.ne.s32.totalorder %s69, %s71
      %p75 = scmp.eq.s32.totalorder %s14, 0
      %p76 = por %p74, %p75
      %p77 = scmp.ne.s32.totalorder %s69, %s71
      %p78 = scmp.eq.s32.totalorder %s19, 1
      %p79 = por %p77, %p78
      %p80 = scmp.ne.s32.totalorder %s71, %s72
      %p81 = scmp.eq.s32.totalorder %s19, 0
      %p82 = por %p80, %p81
      %p83 = scmp.ne.s32.totalorder %s71, %s72
      %p84 = scmp.eq.s32.totalorder %s20, 1
      %p85 = por %p83, %p84
      %p87 = scmp.ne.s32.totalorder %s72, %s86
      %p88 = scmp.eq.s32.totalorder %s20, 0
      %p89 = por %p87, %p88
      %s91 = sadd.s32 %s90, 1
      %p94 = scmp.eq.s32.totalorder %s14, 1
      %p95 = scmp.ne.s32.totalorder %s90, %s92
      %p96 = scmp.eq.s32.totalorder %s14, 0
      %p97 = por %p95, %p96
      %p98 = scmp.ne.s32.totalorder %s90, %s92
      %p99 = scmp.eq.s32.totalorder %s19, 1
      %p100 = por %p98, %p99
      %p101 = scmp.ne.s32.totalorder %s92, %s93
      %p102 = scmp.eq.s32.totalorder %s19, 0
      %p103 = por %p101, %p102
      %p104 = scmp.ne.s32.totalorder %s92, %s93
      %p105 = scmp.eq.s32.totalorder %s20, 1
      %p106 = por %p104, %p105
      %p108 = scmp.ne.s32.totalorder %s93, %s107
      %p109 = scmp.eq.s32.totalorder %s20, 0
      %p110 = por %p108, %p109
      %s112 = sadd.s32 %s111, 1
      %p115 = scmp.eq.s32.totalorder %s14, 1
      %p116 = scmp.ne.s32.totalorder %s111, %s113
      %p117 = scmp.eq.s32.totalorder %s14, 0
      %p118 = por %p116, %p117
      %p119 = scmp.ne.s32.totalorder %s111, %s113
      %p120 = scmp.eq.s32.totalorder %s19, 1
      %p121 = por %p119, %p120
      %p122 = scmp.ne.s32.totalorder %s113, %s114
      %p123 = scmp.eq.s32.totalorder %s19, 0
      %p124 = por %p122, %p123
      %p125 = scmp.ne.s32.totalorder %s113, %s114
      %p126 = scmp.eq.s32.totalorder %s20, 1
      %p127 = por %p125, %p126
      %p129 = scmp.ne.s32.totalorder %s114, %s128
      %p130 = scmp.eq.s32.totalorder %s20, 0
      %p131 = por %p129, %p130
      %s132 = ssub.s32 %s14, %s21
      %p133 = scmp.eq.s32.totalorder %s132, 0
      %s135 = sadd.s32 %s134, 1
      %s136 = scalar_select %p133, %s134, %s135
      %p139 = pneg %p133
      %p140 = scmp.eq.s32.totalorder %s14, 1
      %p141 = por %p139, %p140
      %p142 = scmp.ne.s32.totalorder %s134, %s137
      %p143 = scmp.eq.s32.totalorder %s14, 0
      %p144 = por %p142, %p143
      %p145 = scmp.ne.s32.totalorder %s134, %s137
      %p146 = scmp.eq.s32.totalorder %s19, 1
      %p147 = por %p145, %p146
      %p148 = scmp.ne.s32.totalorder %s137, %s138
      %p149 = scmp.eq.s32.totalorder %s19, 0
      %p150 = por %p148, %p149
      %p151 = scmp.ne.s32.totalorder %s137, %s138
      %p152 = scmp.eq.s32.totalorder %s20, 1
      %p153 = por %p151, %p152
      %p155 = scmp.ne.s32.totalorder %s138, %s154
      %p156 = scmp.eq.s32.totalorder %s20, 0
      %p157 = por %p155, %p156
      %p158 = scmp.le.s32.totalorder 1, %s14
      %p159 = scmp.lt.s32.totalorder %s14, 3
      %p160 = pnand %p158, %p159
      %p161 = pneg %p160
      // Predicated region
      $region9: #{tpu_custom_call.1} parent=5 // pred_check
        _
      $region10: #{tpu_custom_call.1} parent=5 // pred_check_branch
        %163 = sbr.rel (%p160) target = $region12
      $region11: #{tpu_custom_call.1} parent=5 // pred_region
        %s164 = ssub.s32 %s14, 1
        // Predicated region
        $region13: #{tpu_custom_call.1} parent=11 // pred_check
          %p165 = pneg %p61
        $region14: #{tpu_custom_call.1} parent=11 // pred_check_branch
          %167 = sbr.rel (%p165) target = $region16
        $region15: #{tpu_custom_call.1} parent=11 // pred_region
          _
        $region16: #{tpu_custom_call.1} parent=11 // pred_fallthru
          _
        // Predicated region
        $region17: #{tpu_custom_call.1} parent=11 // pred_check
          %p168 = pneg %p82
        $region18: #{tpu_custom_call.1} parent=11 // pred_check_branch
          %170 = sbr.rel (%p168) target = $region20
        $region19: #{tpu_custom_call.1} parent=11 // pred_region
          _
        $region20: #{tpu_custom_call.1} parent=11 // pred_fallthru
          _
        // Predicated region
        $region21: #{tpu_custom_call.1} parent=11 // pred_check
          %p171 = pneg %p103
        $region22: #{tpu_custom_call.1} parent=11 // pred_check_branch
          %173 = sbr.rel (%p171) target = $region24
        $region23: #{tpu_custom_call.1} parent=11 // pred_region
          _
        $region24: #{tpu_custom_call.1} parent=11 // pred_fallthru
          _
        // Predicated region
        $region25: #{tpu_custom_call.1} parent=11 // pred_check
          %p174 = pneg %p124
        $region26: #{tpu_custom_call.1} parent=11 // pred_check_branch
          %176 = sbr.rel (%p174) target = $region28
        $region27: #{tpu_custom_call.1} parent=11 // pred_region
          _
        $region28: #{tpu_custom_call.1} parent=11 // pred_fallthru
          _
      $region12: #{tpu_custom_call.1} parent=5 // pred_fallthru
        _
      %p177 = scmp.lt.s32.totalorder %s14, 2
      // Predicated region
      $region29: #{tpu_custom_call.1} parent=5 // pred_check
        %p178 = pneg %p177
      $region30: #{tpu_custom_call.1} parent=5 // pred_check_branch
        %180 = sbr.rel (%p178) target = $region32
      $region31: #{tpu_custom_call.1} parent=5 // pred_region
        // Predicated region
        $region33: #{tpu_custom_call.1} parent=31 // pred_check
          %p181 = pneg %p34
        $region34: #{tpu_custom_call.1} parent=31 // pred_check_branch
          %183 = sbr.rel (%p181) target = $region36
        $region35: #{tpu_custom_call.1} parent=31 // pred_region
          %p184 = scmp.lt.s32.totalorder %s14, 1
          %s185 = scalar_select %p184, %s14, 1
          %s186 = smul.addr %s185, 2
          %s187 = scalar_lea.vmem %s0, %s186
        $region36: #{tpu_custom_call.1} parent=31 // pred_fallthru
          _
      $region32: #{tpu_custom_call.1} parent=5 // pred_fallthru
        _
      %p188 = scmp.le.s32.totalorder 1, %s14
      %p189 = scmp.lt.s32.totalorder %s14, 3
      %p190 = pnand %p188, %p189
      %p191 = pneg %p190
      // Predicated region
      $region37: #{tpu_custom_call.1} parent=5 // pred_check
        _
      $region38: #{tpu_custom_call.1} parent=5 // pred_check_branch
        %193 = sbr.rel (%p190) target = $region40
      $region39: #{tpu_custom_call.1} parent=5 // pred_region
        %s194 = ssub.s32 %s14, 1
        %p195 = scmp.lt.s32.totalorder %s19, 1
        %s196 = scalar_select %p195, %s19, 1
        %s197 = smul.addr %s196, 2
        %s198 = scalar_lea.vmem %s0, %s197
        %p199 = pneg %p40
        %p200 = pneg %p37
        %p201 = pneg %p61
        %p202 = pneg %p58
        %p203 = pneg %p82
        %p204 = pneg %p79
        %p205 = pneg %p103
        %p206 = pneg %p100
        %p207 = pneg %p124
        %p208 = pneg %p121
        %p209 = pneg %p150
        %p210 = pneg %p147
        %s211 = sand.u32 %s137, 1
        %s212 = scalar_lea.sflag [#allocation3], %s211
        %s213 = sand.u32 %s137, 1
        %s214 = smul.addr %s213, 2
        %s215 = scalar_lea.vmem [#allocation2], %s214
        %p216 = scmp.lt.s32.totalorder %s19, 1
        %s217 = scalar_select %p216, %s19, 1
        %s218 = smul.addr %s217, 2
        %s219 = scalar_lea.vmem %s0, %s218
        %v220 = vld [vmem:[%s219] sm:$0x1]
        %v221 = vld [vmem:[%s219 + $0x1] sm:$0x1]
        %v222 = vld [vmem:[%s1] sm:$0xff]
        %v223 = vld [vmem:[%s1 + $0x8] sm:$0xff]
        %225 = vset.pattern.permute.xlu0 0
        %226 = vperm.xlu0 %225, %v222
        %v227 = vpop.permute.xlu0 %226
        %230 = vset.pattern.permute.xlu0 0
        %231 = vperm.xlu0 %230, %v223
        %v232 = vpop.permute.xlu0 %231
        %v234 = vlaneseq
        %v235 = vshrl.u32 %v234, 7
        %v236 = vsub.s32 0, %v235
        %v237 = vrot.slane %v220, %v236
        %v238 = vmul.f32 %v227, %v237
        %v239 = vmul.f32 %v232, %v237
        %240 = vset.pattern.permute.xlu0 1
        %241 = vperm.xlu0 %240, %v222
        %v242 = vpop.permute.xlu0 %241
        %244 = vset.pattern.permute.xlu0 1
        %245 = vperm.xlu0 %244, %v223
        %v246 = vpop.permute.xlu0 %245
        %v248 = vlaneseq
        %v249 = vshrl.u32 %v248, 7
        %v250 = vsub.s32 0, %v249
        %v251 = vrot.slane %v221, %v250
        %v252 = vmul.f32 %v242, %v251
        %v253 = vmul.f32 %v246, %v251
        %v254 = vadd.f32 %v238, %v252
        %v255 = vadd.f32 %v239, %v253
        %v256 = vld [vmem:[%s2] sm:$0xff]
        %v257 = vld [vmem:[%s2 + $0x8] sm:$0xff]
        %259 = vset.pattern.permute.xlu0 0
        %260 = vperm.xlu0 %259, %v256
        %v261 = vpop.permute.xlu0 %260
        %264 = vset.pattern.permute.xlu0 0
        %265 = vperm.xlu0 %264, %v257
        %v266 = vpop.permute.xlu0 %265
        %v268 = vadd.f32 %v254, %v261
        %v269 = vadd.f32 %v255, %v266
        %v270 = vmax.f32 %v268, 0.0
        %v271 = vmax.f32 %v269, 0.0
        %v272 = vld [vmem:[%s3] sm:$0x3]
        %v273 = vld [vmem:[%s4] sm:$0x3]
        %275 = vset.pattern.permute.xlu0 0
        %276 = vperm.xlu0 %275, %v273
        %v277 = vpop.permute.xlu0 %276
        %vm279 = vcmask 130048
        %v281 = vsel %vm279, %v272, 0
        %283 = vmatprep.subr.mxu0 0.0
        %284 = vmatpush1.msra.mxu0 %v270
        %285 = vmatprep.subr.mxu0 0.0
        %286 = vmatpush1.msra.mxu0 %v271
        %287 = vmatprep.subr.mxu0 0.0
        %288 = vmatpush1.msra.mxu0 0.0
        %289 = vmatprep.subr.mxu0 0.0
        %290 = vmatpush1.msra.mxu0 0.0
        %291 = vmatprep.subr.mxu0 0.0
        %292 = vmatpush1.msra.mxu0 0.0
        %293 = vmatprep.subr.mxu0 0.0
        %294 = vmatpush1.msra.mxu0 0.0
        %295 = vmatprep.subr.mxu0 0.0
        %296 = vmatpush1.msra.mxu0 0.0
        %297 = vmatprep.subr.mxu0 0.0
        %298 = vmatpush1.msra.mxu0 0.0
        %299 = vmatprep.subr.mxu0 0.0
        %300 = vmatpush1.msra.mxu0 0.0
        %301 = vmatprep.subr.mxu0 0.0
        %302 = vmatpush1.msra.mxu0 0.0
        %303 = vmatprep.subr.mxu0 0.0
        %304 = vmatpush1.msra.mxu0 0.0
        %305 = vmatprep.subr.mxu0 0.0
        %306 = vmatpush1.msra.mxu0 0.0
        %307 = vmatprep.subr.mxu0 0.0
        %308 = vmatpush1.msra.mxu0 0.0
        %309 = vmatprep.subr.mxu0 0.0
        %310 = vmatpush1.msra.mxu0 0.0
        %311 = vmatprep.subr.mxu0 0.0
        %312 = vmatpush1.msra.mxu0 0.0
        %313 = vmatprep.subr.mxu0 0.0
        %314 = vmatpush1.msra.mxu0 0.0
        %315 = vmatprep.subr.mxu0 0.0
        %316 = vmatpush1.msra.mxu0 0.0
        %317 = vmatprep.subr.mxu0 0.0
        %318 = vmatpush1.msra.mxu0 0.0
        %319 = vmatprep.subr.mxu0 0.0
        %320 = vmatpush1.msra.mxu0 0.0
        %321 = vmatprep.subr.mxu0 0.0
        %322 = vmatpush1.msra.mxu0 0.0
        %323 = vmatprep.subr.mxu0 0.0
        %324 = vmatpush1.msra.mxu0 0.0
        %325 = vmatprep.subr.mxu0 0.0
        %326 = vmatpush1.msra.mxu0 0.0
        %327 = vmatprep.subr.mxu0 0.0
        %328 = vmatpush1.msra.mxu0 0.0
        %329 = vmatprep.subr.mxu0 0.0
        %330 = vmatpush1.msra.mxu0 0.0
        %331 = vmatprep.subr.mxu0 0.0
        %332 = vmatpush1.msra.mxu0 0.0
        %333 = vmatprep.subr.mxu0 0.0
        %334 = vmatpush1.msra.mxu0 0.0
        %335 = vmatprep.subr.mxu0 0.0
        %336 = vmatpush1.msra.mxu0 0.0
        %337 = vmatprep.subr.mxu0 0.0
        %338 = vmatpush1.msra.mxu0 0.0
        %339 = vmatprep.subr.mxu0 0.0
        %340 = vmatpush1.msra.mxu0 0.0
        %341 = vmatprep.subr.mxu0 0.0
        %342 = vmatpush1.msra.mxu0 0.0
        %343 = vmatprep.subr.mxu0 0.0
        %344 = vmatpush1.msra.mxu0 0.0
        %345 = vmatprep.subr.mxu0 0.0
        %346 = vmatpush1.msra.mxu0 0.0
        %347 = vmatprep.mubr.f32.mxu0 0.0
        %348 = vmatmul.mubr.f32.gmra.mrb[0].mxu0 %v281
        %v349 = vpop.f32.mrb[0].mxu0
        %v350 = vadd.f32 %v277, %v349
        %v351 = vpop.f32.mrb[0].mxu0
        %352 = vdwg.mxu0
        %353 = vst [vmem:[%s215] sm:$0x3] %v350
        %s354 = sand.u32 %s137, 1
        %s355 = scalar_lea.sflag [#allocation3], %s354
        %s356 = sand.u32 %s137, 1
        %s357 = smul.addr %s356, 2
        %s358 = scalar_lea.vmem [#allocation2], %s357
        // Predicated region
        $region41: #{tpu_custom_call.1} parent=39 // pred_check
          %p359 = pneg %p147
        $region42: #{tpu_custom_call.1} parent=39 // pred_check_branch
          %361 = sbr.rel (%p359) target = $region44
        $region43: #{tpu_custom_call.1} parent=39 // pred_region
          %s363 = ssub.s32 32, 32
          %364 = vsyncadd %s355, %s363
          %s365 = smul.addr %s19, 32
          %s366 = scalar_lea.hbm %s5, %s365
          %s368 = sshll.u32 %s358, 4
          %s369 = int_to_ptr.vmem [resolvable:$true] %s368
          %371 = dma.vmem_to_hbm [thread:$0]  %s369, 32, %s366, %s355
        $region44: #{tpu_custom_call.1} parent=39 // pred_fallthru
          _
      $region40: #{tpu_custom_call.1} parent=5 // pred_fallthru
        _
      %p372 = scmp.le.s32.totalorder 2, %s14
      // Predicated region
      $region45: #{tpu_custom_call.1} parent=5 // pred_check
        %p373 = pneg %p372
      $region46: #{tpu_custom_call.1} parent=5 // pred_check_branch
        %375 = sbr.rel (%p373) target = $region48
      $region47: #{tpu_custom_call.1} parent=5 // pred_region
        %s376 = ssub.s32 %s14, 2
        // Predicated region
        $region49: #{tpu_custom_call.1} parent=47 // pred_check
          %p377 = pneg %p153
        $region50: #{tpu_custom_call.1} parent=47 // pred_check_branch
          %379 = sbr.rel (%p377) target = $region52
        $region51: #{tpu_custom_call.1} parent=47 // pred_region
          %s380 = sand.u32 %s138, 1
          %s381 = scalar_lea.sflag [#allocation3], %s380
          %s382 = sand.u32 %s138, 1
          %s383 = smul.addr %s382, 2
          %s384 = scalar_lea.vmem [#allocation2], %s383
          %385 = dma.done %s381, 32
        $region52: #{tpu_custom_call.1} parent=47 // pred_fallthru
          _
      $region48: #{tpu_custom_call.1} parent=5 // pred_fallthru
        _
    $region6: #{tpu_custom_call.1} parent=1 // loop_footer
      %s18 = sadd.s32 1, %s14
    $region7: #{tpu_custom_call.1} parent=1 // loop_footer_branch
      %13 = sbr.rel target = $region3
    $region8: #{tpu_custom_call.1} parent=1 // loop_exit
      _
    %386 = vsyncpa [#allocation3], 1
    %s387 = scalar_lea.sflag [#allocation3], 1
    %388 = vsyncpa %s387, 1

</llo_original>
